<compile_context>
chip_gen: v5e
topology: v5e:2x2
jax: 0.10.0
libtpu: 0.0.40
codegen_flags: <defaults>
</compile_context>

<pallas_src>
import functools

import jax
import jax.numpy as jnp
from jax.experimental import pallas as pl
from jax.experimental.pallas import tpu as pltpu


def _round_up(x, m):
    return (x + m - 1) // m * m


def _round_down(x, m):
    return (x // m) * m


# ---------------------------------------------------------------------------
# Kernel 1: streamed memory-bank matmul + online-softmax logsumexp per query row
# ---------------------------------------------------------------------------
def _bank_lse_kernel(zn_ref, mem_ref, lse_ref, m_sc, l_sc, *, n_valid):
    n = pl.program_id(1)
    tn = mem_ref.shape[1]
    neg = jnp.float32(-1e30)

    @pl.when(n == 0)
    def _():
        m_sc[...] = jnp.full_like(m_sc, neg)
        l_sc[...] = jnp.zeros_like(l_sc)

    # Native (tb, D) x (D, tn) bf16 MXU contraction with f32 accumulation.
    sim = jax.lax.dot_general(zn_ref[...], mem_ref[...],
                              (((1,), (0,)), ((), ())),
                              preferred_element_type=jnp.float32)

    # Mask zero-padded bank columns (only the last N tile can contain them).
    col = n * tn + jax.lax.broadcasted_iota(jnp.int32, sim.shape, 1)
    sim = jnp.where(col < n_valid, sim, neg)

    # Online softmax statistics.
    m_prev = m_sc[...]
    m_new = jnp.maximum(m_prev, jnp.max(sim, axis=1, keepdims=True))
    l_sc[...] = (l_sc[...] * jnp.exp(m_prev - m_new)
                 + jnp.sum(jnp.exp(sim - m_new), axis=1, keepdims=True))
    m_sc[...] = m_new

    @pl.when(n == pl.num_programs(1) - 1)
    def _():
        lse_ref[...] = m_sc[...] + jnp.log(l_sc[...])


def memory_bank_lse(zn, memory_t, *, n_valid, tn, tb=None):
    """Per-row logsumexp of (zn @ memory_t) over the first n_valid bank columns.

    zn:        (B, D) bf16, L2-normalized with 1/t already folded in.
    memory_t:  (D, n_pad) bf16, n_pad a multiple of tn (padding masked in-kernel).
    Returns (B,) f32.
    """
    B, D = zn.shape
    D2, n_pad = memory_t.shape
    assert D == D2 and n_pad % tn == 0

    # One query block if the batch allows: the bank is re-streamed from HBM once per
    # b-block, so fewer / bigger b-blocks is the dominant bandwidth lever.
    # TODO(synk): on v7x prefer >=2 b-blocks so "parallel" shards across both TCs.
    tb = min(_round_up(B, 8), 1024) if tb is None else tb
    b_pad = _round_up(B, tb)
    if b_pad != B:
        zn = jnp.pad(zn, ((0, b_pad - B), (0, 0)))   # tiny (< tb rows of bf16)

    grid = (b_pad // tb, n_pad // tn)
    lse = pl.pallas_call(
        functools.partial(_bank_lse_kernel, n_valid=n_valid),
        out_shape=jax.ShapeDtypeStruct((b_pad, 1), jnp.float32),
        grid=grid,
        in_specs=[
            pl.BlockSpec((tb, D), lambda b, n: (b, 0)),   # queries, resident over n
            pl.BlockSpec((D, tn), lambda b, n: (0, n)),   # streamed bank tile (bf16)
        ],
        out_specs=pl.BlockSpec((tb, 1), lambda b, n: (b, 0)),
        scratch_shapes=[
            pltpu.VMEM((tb, 1), jnp.float32),   # running max
            pltpu.VMEM((tb, 1), jnp.float32),   # running softmax denom
        ],
        compiler_params=pltpu.CompilerParams(
            dimension_semantics=("parallel", "arbitrary")),
    )(zn, memory_t)
    return lse[:B, 0]


# ---------------------------------------------------------------------------
# Kernel 2: MSELoss(reduction='mean'), row-tiled, in-kernel cast + ragged mask
# ---------------------------------------------------------------------------
def _mse_kernel(a_ref, b_ref, out_ref, acc_ref, *, n_rows, denom):
    i = pl.program_id(0)
    tr = a_ref.shape[0]

    @pl.when(i == 0)
    def _():
        acc_ref[...] = jnp.zeros_like(acc_ref)

    row = i * tr + jax.lax.broadcasted_iota(jnp.int32, (tr, 1), 0)
    d = jnp.where(row < n_rows,
                  a_ref[...].astype(jnp.float32) - b_ref[...].astype(jnp.float32),
                  0.0)
    acc_ref[...] += jnp.sum(d * d, keepdims=True)

    @pl.when(i == pl.num_programs(0) - 1)
    def _():
        out_ref[...] = acc_ref[...] * (1.0 / denom)


def mse_loss(a, b, *, row_block_bytes=4 << 20):
    # No wrapper-side f32 cast or padding: casts live in the kernel, the ragged
    # last row block is masked with row < n_rows.
    a2 = a.reshape(a.shape[0], -1)
    b2 = b.reshape(b.shape[0], -1)
    B, F = a2.shape
    tr = max(8, _round_down(row_block_bytes // (4 * F), 8))
    tr = min(tr, _round_up(B, 8))
    out = pl.pallas_call(
        functools.partial(_mse_kernel, n_rows=B, denom=float(B * F)),
        out_shape=jax.ShapeDtypeStruct((1, 1), jnp.float32),
        grid=(pl.cdiv(B, tr),),
        in_specs=[pl.BlockSpec((tr, F), lambda i: (i, 0)),
                  pl.BlockSpec((tr, F), lambda i: (i, 0))],
        out_specs=pl.BlockSpec((1, 1), lambda i: (0, 0)),
        scratch_shapes=[pltpu.VMEM((1, 1), jnp.float32)],
        compiler_params=pltpu.CompilerParams(dimension_semantics=("arbitrary",)),
    )(a2, b2)
    return out[0, 0]


# ---------------------------------------------------------------------------
# Kernel 3: CrossEntropyLoss (mean), row-tiled, no one-hot, no wrapper pad/cast
# ---------------------------------------------------------------------------
def _ce_kernel(logits_ref, labels_ref, out_ref, acc_ref, *, n_valid):
    i = pl.program_id(0)
    tr = logits_ref.shape[0]

    @pl.when(i == 0)
    def _():
        acc_ref[...] = jnp.zeros_like(acc_ref)

    row = i * tr + jax.lax.broadcasted_iota(jnp.int32, (tr, 1), 0)
    valid = row < n_valid
    logits = jnp.where(valid, logits_ref[...].astype(jnp.float32), 0.0)
    m = jnp.max(logits, axis=1, keepdims=True)
    lse = jnp.log(jnp.sum(jnp.exp(logits - m), axis=1, keepdims=True)) + m
    col = jax.lax.broadcasted_iota(jnp.int32, logits.shape, 1)
    picked = jnp.sum(jnp.where(col == labels_ref[...], logits, 0.0),
                     axis=1, keepdims=True)
    acc_ref[...] += jnp.sum(jnp.where(valid, lse - picked, 0.0), keepdims=True)

    @pl.when(i == pl.num_programs(0) - 1)
    def _():
        out_ref[...] = acc_ref[...] * (1.0 / n_valid)


def cross_entropy_loss(logits, labels, *, tr_max=256):
    B, C = logits.shape
    tr = min(_round_up(B, 8), _round_up(tr_max, 8))
    lb = labels.reshape(-1, 1).astype(jnp.int32)       # tiny
    out = pl.pallas_call(
        functools.partial(_ce_kernel, n_valid=B),
        out_shape=jax.ShapeDtypeStruct((1, 1), jnp.float32),
        grid=(pl.cdiv(B, tr),),
        in_specs=[pl.BlockSpec((tr, C), lambda i: (i, 0)),
                  pl.BlockSpec((tr, 1), lambda i: (i, 0))],
        out_specs=pl.BlockSpec((1, 1), lambda i: (0, 0)),
        scratch_shapes=[pltpu.VMEM((1, 1), jnp.float32)],
        compiler_params=pltpu.CompilerParams(dimension_semantics=("arbitrary",)),
    )(logits, lb)
    return out[0, 0]


# ---------------------------------------------------------------------------
# ModelLoss (training branch: index is not None and index.max() < n_samples)
# ---------------------------------------------------------------------------
class ModelLossPallas:
    def __init__(self, n_samples, npc_dim=128, neighbors=1, temperature=0.07,
                 momentum=0.5, const=1e-8, key=None, tn=None):
        key = jax.random.PRNGKey(0) if key is None else key
        std = float(1.0 / jnp.sqrt(jnp.asarray(npc_dim / 3.0, jnp.float32)))
        mem = jax.random.uniform(key, (n_samples, npc_dim), dtype=jnp.float32)
        mem = mem * 2.0 * std - std                       # torch.rand * 2*std - std

        # Big 128-aligned bank tiles (few grid steps, large DMAs); pad so the N grid
        # axis divides evenly; padded columns are masked inside the kernel.
        if tn is None:
            tn = min(512, _round_up(n_samples, 128))
        assert tn % 128 == 0
        n_pad = _round_up(n_samples, tn)
        if n_pad != n_samples:
            mem = jnp.pad(mem, ((0, n_pad - n_samples), (0, 0)))
        # Stored TRANSPOSED (D, N) and in bf16: native MXU layout (no per-tile XLU
        # transpose) and half the HBM traffic of the dominant bank stream.
        # TODO(synk): fp8 bank on v7x / int8 + per-row scale on v5e/v6e.
        self.memory_t = jnp.asarray(mem.T, dtype=jnp.bfloat16)     # (D, n_pad)

        self.inv_t = float(1.0 / temperature)
        self.momentum = float(momentum)    # used only by the backward-time bank update
        self.const = float(const)
        self.n_samples = n_samples
        self.npc_dim = npc_dim
        self.neighbors_num = neighbors
        self._tn = tn

        self.flag = -jnp.arange(n_samples, dtype=jnp.int32) - 1    # all "instance" at init
        self.neighbors = jnp.zeros((n_samples,), jnp.int32)        # filled by update_anchor

    def __call__(self, y_hat, y, tb=None):
        pred_cls, x_hat, zp, index, local_nbr = y_hat
        cls, x_mid = y
        # Training branch of ModelLoss.forward (index provided and < n_samples).
        local_nbr = index if local_nbr is None else local_nbr
        B = zp.shape[0]
        index = index.astype(jnp.int32)
        local_nbr = local_nbr.astype(jnp.int32)

        # ---- O(B*D) glue stays in JAX; the (B, N) softmax never leaves VMEM ----
        # F.normalize(p=2, dim=1) (eps=1e-12) with 1/t folded in; one bf16 cast.
        zp32 = zp.astype(jnp.float32)
        ssq = jnp.sum(zp32 * zp32, axis=1, keepdims=True)
        zn_bf16 = (zp32 * (jax.lax.rsqrt(jnp.maximum(ssq, 1e-24)) * self.inv_t)
                   ).astype(jnp.bfloat16)

        flags = self.flag[index]
        anchor_nbr = self.neighbors[index]

        # Hoisted column gathers: the three logits per row are just
        # zn_row . memory[:, col]; gather 3*B bank columns and contract in f32.
        all_idx = jnp.stack([index, local_nbr, anchor_nbr], axis=1)        # (B, 3)
        g = jnp.take(self.memory_t, all_idx, axis=1).astype(jnp.float32)   # (D, B, 3)
        picked = jnp.einsum('bd,dbk->bk', zn_bf16.astype(jnp.float32), g)  # (B, 3)

        # Heavy part: per-row logsumexp over the streamed bf16 bank (Pallas kernel).
        lse = memory_bank_lse(zn_bf16, self.memory_t,
                              n_valid=self.n_samples, tn=self._tn, tb=tb)  # (B,)

        p = jnp.exp(picked - lse[:, None])         # softmax probs at the 3 columns
        p_idx, p_ln, p_an = p[:, 0], p[:, 1], p[:, 2]
        is_inst = flags < 0
        inst_terms = jnp.where(is_inst, -jnp.log(p_idx + p_ln + self.const), 0.0)
        anch_terms = jnp.where(is_inst, 0.0,
                               -jnp.log(p_idx + p_an + p_ln + self.const))
        instance_loss = jnp.sum(inst_terms) / B * 2.0
        anchor_loss = jnp.sum(anch_terms) / B * 2.0

        recon_loss = mse_loss(x_mid, x_hat)
        cls_loss = cross_entropy_loss(pred_cls, cls)

        loss = recon_loss + instance_loss + anchor_loss + cls_loss
        loss_dt = {'cls_loss': cls_loss, 'recon_loss': recon_loss,
                   'instance_loss': instance_loss, 'anchor_loss': anchor_loss}
        return loss, loss_dt
        # TODO(synk): eval-mode branch (index=None -> argmax over the full softmax,
        # flag gather, anchor_ratio), MemoryCluster.update_anchor, and the MemoryBank
        # backward-time in-place memory update are not part of this forward kernel.


if __name__ == "__main__":
    B, D, N, C = 8, 128, 300, 16       # batch, npc_dim, n_samples, num classes
    CH, H, W = 4, 8, 8                 # reconstruction tensor (NCHW)

    key = jax.random.PRNGKey(0)
    ks = jax.random.split(key, 9)

    # tn=128 with N=300 (padded to 384) exercises multi-tile online softmax + masking.
    model = ModelLossPallas(n_samples=N, npc_dim=D, key=ks[0], tn=128)
    # Populate anchor metadata deterministically so both loss branches are exercised
    # (in the reference these buffers are filled by MemoryCluster.update_anchor).
    model.flag = model.flag.at[: N // 2].set(1)
    model.neighbors = jax.random.randint(ks[8], (N,), 0, N, jnp.int32)

    zp = jax.random.normal(ks[1], (B, D), jnp.float32)
    pred_cls = jax.random.normal(ks[2], (B, C), jnp.float32)
    cls = jax.random.randint(ks[3], (B,), 0, C, jnp.int32)
    x_hat = jax.random.normal(ks[4], (B, CH, H, W), jnp.float32)
    x_mid = jax.random.normal(ks[5], (B, CH, H, W), jnp.float32)
    index = jax.random.randint(ks[6], (B,), 0, N, jnp.int32)
    local_nbr = jax.random.randint(ks[7], (B,), 0, N, jnp.int32)

    loss, loss_dt = model((pred_cls, x_hat, zp, index, local_nbr), (cls, x_mid))
    loss = jax.block_until_ready(loss)

    # ---- pure-JAX reference (mirrors the torch forward, using the bf16 bank) ----
    rows = jnp.arange(B)
    zn = zp / jnp.maximum(jnp.linalg.norm(zp, axis=1, keepdims=True), 1e-12)
    zn_bf = (zn * model.inv_t).astype(jnp.bfloat16).astype(jnp.float32)
    mem = model.memory_t[:, :N].astype(jnp.float32)                 # (D, N)
    sim = zn_bf @ mem                                                # (B, N)
    pred = jax.nn.softmax(sim, axis=1)
    p_idx = pred[rows, index]
    p_ln = pred[rows, local_nbr]
    p_an = pred[rows, model.neighbors[index]]
    inst = model.flag[index] < 0
    ref_inst = -jnp.sum(jnp.where(inst, jnp.log(p_idx + p_ln + model.const), 0.0)) / B * 2.0
    ref_anch = -jnp.sum(jnp.where(inst, 0.0,
                                  jnp.log(p_idx + p_an + p_ln + model.const))) / B * 2.0
    ref_mse = jnp.mean((x_mid - x_hat) ** 2)
    mc = jnp.max(pred_cls, axis=1)
    ref_lse = jnp.log(jnp.sum(jnp.exp(pred_cls - mc[:, None]), axis=1)) + mc
    ref_ce = jnp.mean(ref_lse - pred_cls[rows, cls])

    assert bool(jnp.isfinite(loss))
    assert jnp.allclose(loss_dt['instance_loss'], ref_inst, rtol=5e-2, atol=5e-3), \
        (loss_dt['instance_loss'], ref_inst)
    assert jnp.allclose(loss_dt['anchor_loss'], ref_anch, rtol=5e-2, atol=5e-3), \
        (loss_dt['anchor_loss'], ref_anch)
    assert jnp.allclose(loss_dt['recon_loss'], ref_mse, rtol=1e-4, atol=1e-5)
    assert jnp.allclose(loss_dt['cls_loss'], ref_ce, rtol=1e-4, atol=1e-5)
    for v in loss_dt.values():
        jax.block_until_ready(v)
    print("KERNEL_OK")
</pallas_src>

<mosaic_0001>
module attributes {stable_mosaic.version = 11 : i64} {
  func.func @_bank_lse_kernel(%arg0: i32, %arg1: i32, %arg2: memref<8x128xbf16, #tpu.memory_space<vmem>>, %arg3: memref<128x128xbf16, #tpu.memory_space<vmem>>, %arg4: memref<8x1xf32, #tpu.memory_space<vmem>>, %arg5: memref<8x1xf32, #tpu.memory_space<vmem>>, %arg6: memref<8x1xf32, #tpu.memory_space<vmem>>) attributes {dimension_semantics = [#tpu.dimension_semantics<parallel>, #tpu.dimension_semantics<arbitrary>], iteration_bounds = array<i64: 1, 3>, scalar_prefetch = 0 : i64, scratch_operands = 2 : i64, tpu.core_type = #tpu.core_type<tc>, window_params = [{transform_indices = @transform_0, window_bounds = array<i64: 8, 128>}, {transform_indices = @transform_1, window_bounds = array<i64: 128, 128>}, {transform_indices = @transform_2, window_bounds = array<i64: 8, 1>}]} {
    %c0_i32 = arith.constant 0 : i32
    %0 = arith.cmpi eq, %arg1, %c0_i32 : i32
    %1 = arith.extui %0 : i1 to i32
    %cst = arith.constant -1.000000e+30 : f32
    %c0_i32_0 = arith.constant 0 : i32
    %2 = arith.cmpi ne, %1, %c0_i32_0 : i32
    scf.if %2 {
      %33 = vector.broadcast %cst : f32 to vector<8x1xf32>
      %c0_17 = arith.constant 0 : index
      %c0_18 = arith.constant 0 : index
      %34 = vector.load %arg5[%c0_17, %c0_18] : memref<8x1xf32, #tpu.memory_space<vmem>>, vector<8x1xf32>
      tpu.vector_store %arg5[%c0_17, %c0_18], %33 {strides = array<i32>} : memref<8x1xf32, #tpu.memory_space<vmem>>, vector<8x1xf32>,
      %cst_19 = arith.constant 0.000000e+00 : f32
      %35 = vector.broadcast %cst_19 : f32 to vector<8x1xf32>
      %c0_20 = arith.constant 0 : index
      %c0_21 = arith.constant 0 : index
      %36 = vector.load %arg6[%c0_20, %c0_21] : memref<8x1xf32, #tpu.memory_space<vmem>>, vector<8x1xf32>
      tpu.vector_store %arg6[%c0_20, %c0_21], %35 {strides = array<i32>} : memref<8x1xf32, #tpu.memory_space<vmem>>, vector<8x1xf32>,
    } else {
    }
    %c0 = arith.constant 0 : index
    %c0_1 = arith.constant 0 : index
    %3 = vector.load %arg2[%c0, %c0_1] : memref<8x128xbf16, #tpu.memory_space<vmem>>, vector<8x128xbf16>
    %c0_2 = arith.constant 0 : index
    %c0_3 = arith.constant 0 : index
    %4 = vector.load %arg3[%c0_2, %c0_3] : memref<128x128xbf16, #tpu.memory_space<vmem>>, vector<128x128xbf16>
    %cst_4 = arith.constant dense<0.000000e+00> : vector<8x128xf32>
    %5 = tpu.matmul %3, %4, %cst_4 {dimension_numbers = #tpu.dot_dimension_numbers<[1], [0], [0], [1], [0, 0, 1, 1], [], []>} : vector<8x128xbf16>, vector<128x128xbf16>, vector<8x128xf32> -> vector<8x128xf32>
    %c128_i32 = arith.constant 128 : i32
    %6 = arith.muli %arg1, %c128_i32 : i32
    %7 = tpu.iota {dimensions = array<i32: 1>} : vector<8x128xi32>
    %8 = vector.broadcast %6 : i32 to vector<8x128xi32>
    %9 = arith.addi %8, %7 : vector<8x128xi32>
    %c300_i32 = arith.constant 300 : i32
    %10 = vector.broadcast %c300_i32 : i32 to vector<8x128xi32>
    %11 = arith.cmpi slt, %9, %10 : vector<8x128xi32>
    %cst_5 = arith.constant -1.000000e+30 : f32
    %12 = vector.broadcast %cst_5 : f32 to vector<8x128xf32>
    %13 = arith.select %11, %5, %12 : vector<8x128xi1>, vector<8x128xf32>
    %c0_6 = arith.constant 0 : index
    %c0_7 = arith.constant 0 : index
    %14 = vector.load %arg5[%c0_6, %c0_7] : memref<8x1xf32, #tpu.memory_space<vmem>>, vector<8x1xf32>
    %cst_8 = arith.constant dense<0xFF800000> : vector<8xf32>
    %15 = vector.multi_reduction <maximumf>, %13, %cst_8 [1] : vector<8x128xf32> to vector<8xf32>
    %16 = vector.shape_cast %15 : vector<8xf32> to vector<8x1xf32>
    %17 = arith.maximumf %14, %16 : vector<8x1xf32>
    %c0_9 = arith.constant 0 : index
    %c0_10 = arith.constant 0 : index
    %18 = vector.load %arg6[%c0_9, %c0_10] : memref<8x1xf32, #tpu.memory_space<vmem>>, vector<8x1xf32>
    %19 = arith.subf %14, %17 : vector<8x1xf32>
    %20 = math.exp %19 : vector<8x1xf32>
    %21 = arith.mulf %18, %20 : vector<8x1xf32>
    %22 = vector.broadcast %17 : vector<8x1xf32> to vector<8x128xf32>
    %23 = arith.subf %13, %22 : vector<8x128xf32>
    %24 = math.exp %23 : vector<8x128xf32>
    %cst_11 = arith.constant dense<0.000000e+00> : vector<8xf32>
    %25 = vector.multi_reduction <add>, %24, %cst_11 [1] : vector<8x128xf32> to vector<8xf32>
    %26 = vector.shape_cast %25 : vector<8xf32> to vector<8x1xf32>
    %27 = arith.addf %21, %26 : vector<8x1xf32>
    %c0_12 = arith.constant 0 : index
    %c0_13 = arith.constant 0 : index
    %28 = vector.load %arg6[%c0_12, %c0_13] : memref<8x1xf32, #tpu.memory_space<vmem>>, vector<8x1xf32>
    tpu.vector_store %arg6[%c0_12, %c0_13], %27 {strides = array<i32>} : memref<8x1xf32, #tpu.memory_space<vmem>>, vector<8x1xf32>,
    %c0_14 = arith.constant 0 : index
    %c0_15 = arith.constant 0 : index
    %29 = vector.load %arg5[%c0_14, %c0_15] : memref<8x1xf32, #tpu.memory_space<vmem>>, vector<8x1xf32>
    tpu.vector_store %arg5[%c0_14, %c0_15], %17 {strides = array<i32>} : memref<8x1xf32, #tpu.memory_space<vmem>>, vector<8x1xf32>,
    %c2_i32 = arith.constant 2 : i32
    %30 = arith.cmpi eq, %arg1, %c2_i32 : i32
    %31 = arith.extui %30 : i1 to i32
    %c0_i32_16 = arith.constant 0 : i32
    %32 = arith.cmpi ne, %31, %c0_i32_16 : i32
    scf.if %32 {
      %c0_17 = arith.constant 0 : index
      %c0_18 = arith.constant 0 : index
      %33 = vector.load %arg5[%c0_17, %c0_18] : memref<8x1xf32, #tpu.memory_space<vmem>>, vector<8x1xf32>
      %c0_19 = arith.constant 0 : index
      %c0_20 = arith.constant 0 : index
      %34 = vector.load %arg6[%c0_19, %c0_20] : memref<8x1xf32, #tpu.memory_space<vmem>>, vector<8x1xf32>
      %35 = math.log %34 : vector<8x1xf32>
      %36 = arith.addf %33, %35 : vector<8x1xf32>
      %c0_21 = arith.constant 0 : index
      %c0_22 = arith.constant 0 : index
      %37 = vector.load %arg4[%c0_21, %c0_22] : memref<8x1xf32, #tpu.memory_space<vmem>>, vector<8x1xf32>
      tpu.vector_store %arg4[%c0_21, %c0_22], %36 {strides = array<i32>} : memref<8x1xf32, #tpu.memory_space<vmem>>, vector<8x1xf32>,
    } else {
    }
    return
  }
  func.func @transform_0(%arg0: i32, %arg1: i32) -> (i32, i32) {
    %c0_i32 = arith.constant 0 : i32
    %c0_i32_0 = arith.constant 0 : i32
    return %arg0, %c0_i32 : i32, i32
  }
  func.func @transform_1(%arg0: i32, %arg1: i32) -> (i32, i32) {
    %c0_i32 = arith.constant 0 : i32
    %c0_i32_0 = arith.constant 0 : i32
    return %c0_i32, %arg1 : i32, i32
  }
  func.func @transform_2(%arg0: i32, %arg1: i32) -> (i32, i32) {
    %c0_i32 = arith.constant 0 : i32
    %c0_i32_0 = arith.constant 0 : i32
    return %arg0, %c0_i32 : i32, i32
  }
}

</mosaic_0001>

<llo_original>
// kernel: tpu_custom_call.1
$region0: #{tpu_custom_call.1}
  #allocation0 [shape = 'u32[]', space=smem, size = 0x4, offset = 0x4, fixed_abs, tag = 'smem constant byte address 0x4 - core index']
  #allocation1 [shape = 'u32[72,128]{1,0:T(1,128)}', space=vmem, size = 0x9000, scoped, tag = 'internal scratch']
  #allocation2 [shape = 'f32[8,1]{1,0:T(8,128)}', space=vmem, size = 0x1000, scoped, tag = 'scratch operand']
  #allocation3 [shape = 'f32[8,1]{1,0:T(8,128)}', space=vmem, size = 0x1000, scoped, tag = 'scratch operand']
  %s0 = inlined_call_operand.hbm [shape: bf16[8,128], index: 0, kind: input, shape index: {}]
  %s1 = inlined_call_operand.hbm [shape: bf16[128,384], index: 1, kind: input, shape index: {}]
  %s2 = inlined_call_operand.vmem [shape: f32[8,1], index: 2, kind: output, shape index: {}]
  %s3 = sld [smem:[#allocation0]]
  $region57: #{tpu_custom_call.1} parent=0
    _
  %s5 = ssub.s32 1, %s3
  %s6 = scalar_select 0, %s5, %s3
  $region1: #{tpu_custom_call.1} parent=0
    #allocation4 [shape = 'u8[2048]{0}', space=vmem, size = 0x800, scoped, tag = 'input window, operand 0, single buffered']
    #allocation5 [shape = 's32[2]{0}', space=sflag, size = 0x8, scoped, tag = 'scoped memory for tpu_custom_call.1']
    #allocation6 [shape = 'u8[65536]{0}', space=vmem, size = 0x10000, scoped, tag = 'input window, operand 1']
    #allocation7 [shape = 's32[2]{0}', space=sflag, size = 0x8, scoped, tag = 'scoped memory for tpu_custom_call.1']
    %7 = vsyncpa [#allocation5], 0
    %8 = vsyncpa [#allocation7], 0
    %s9 = scalar_lea.sflag [#allocation7], 1
    %10 = vsyncpa %s9, 0
    loop: start=0, step=1, limit=5
    $region2: #{tpu_custom_call.1} parent=1 // loop_pre_header
      _
    $region3: #{tpu_custom_call.1} parent=1 // loop_header
      %s12 = sphi 0, %s16
      %p13 = scmp.ge.s32.totalorder %s12, 5
      %s19 = sphi 0, %s31
      %s20 = sphi 0, %s27
      %s21 = sphi 0, %s19
      %s22 = sphi 0, %s20
      %s23 = sphi 0, %s21
      %s24 = sphi 0, %s22
      %s34 = sphi 0, %s36
      %s37 = sphi 0, %s34
      %s38 = sphi 0, %s37
      %s54 = sphi 0, %s38
      %s60 = sphi 0, %s62
      %s63 = sphi 0, %s60
      %s64 = sphi 0, %s63
      %s80 = sphi 0, %s64
      %s86 = sphi 0, %s88
      %s89 = sphi 0, %s86
      %s90 = sphi 0, %s89
      %s106 = sphi 0, %s90
    $region4: #{tpu_custom_call.1} parent=1 // loop_header_branch
      %15 = sbr.rel (%p13) target = $region8
    $region5: #{tpu_custom_call.1} parent=1 // loop_body
      %s17 = ssub.s32 %s12, 1
      %s18 = ssub.s32 %s12, 2
      %s25 = sadd.s32 1, %s20
      %p26 = scmp.ge.s32.totalorder %s25, 3
      %s27 = scalar_select %p26, 0, %s25
      %s28 = sadd.s32 1, %s19
      %s29 = scalar_select %p26, %s28, %s19
      %p30 = scmp.ge.s32.totalorder %s29, 1
      %s31 = scalar_select %p30, 0, %s29
      %s32 = ssub.s32 %s19, %s31
      %p33 = scmp.eq.s32.totalorder %s32, 0
      %s35 = sadd.s32 %s34, 1
      %s36 = scalar_select %p33, %s34, %s35
      %p39 = pneg %p33
      %p40 = scmp.eq.s32.totalorder %s12, 2
      %p41 = por %p39, %p40
      %p42 = scmp.ne.s32.totalorder %s34, %s37
      %p43 = scmp.eq.s32.totalorder %s12, 0
      %p44 = por %p42, %p43
      %p45 = scmp.ne.s32.totalorder %s34, %s37
      %p46 = scmp.eq.s32.totalorder %s17, 2
      %p47 = por %p45, %p46
      %p48 = scmp.ne.s32.totalorder %s37, %s38
      %p49 = scmp.eq.s32.totalorder %s17, 0
      %p50 = por %p48, %p49
      %p51 = scmp.ne.s32.totalorder %s37, %s38
      %p52 = scmp.eq.s32.totalorder %s18, 2
      %p53 = por %p51, %p52
      %p55 = scmp.ne.s32.totalorder %s38, %s54
      %p56 = scmp.eq.s32.totalorder %s18, 0
      %p57 = por %p55, %p56
      %s58 = ssub.s32 %s20, %s27
      %p59 = scmp.eq.s32.totalorder %s58, 0
      %s61 = sadd.s32 %s60, 1
      %s62 = scalar_select %p59, %s60, %s61
      %p65 = pneg %p59
      %p66 = scmp.eq.s32.totalorder %s12, 2
      %p67 = por %p65, %p66
      %p68 = scmp.ne.s32.totalorder %s60, %s63
      %p69 = scmp.eq.s32.totalorder %s12, 0
      %p70 = por %p68, %p69
      %p71 = scmp.ne.s32.totalorder %s60, %s63
      %p72 = scmp.eq.s32.totalorder %s17, 2
      %p73 = por %p71, %p72
      %p74 = scmp.ne.s32.totalorder %s63, %s64
      %p75 = scmp.eq.s32.totalorder %s17, 0
      %p76 = por %p74, %p75
      %p77 = scmp.ne.s32.totalorder %s63, %s64
      %p78 = scmp.eq.s32.totalorder %s18, 2
      %p79 = por %p77, %p78
      %p81 = scmp.ne.s32.totalorder %s64, %s80
      %p82 = scmp.eq.s32.totalorder %s18, 0
      %p83 = por %p81, %p82
      %s84 = ssub.s32 %s19, %s31
      %p85 = scmp.eq.s32.totalorder %s84, 0
      %s87 = sadd.s32 %s86, 1
      %s88 = scalar_select %p85, %s86, %s87
      %p91 = pneg %p85
      %p92 = scmp.eq.s32.totalorder %s12, 2
      %p93 = por %p91, %p92
      %p94 = scmp.ne.s32.totalorder %s86, %s89
      %p95 = scmp.eq.s32.totalorder %s12, 0
      %p96 = por %p94, %p95
      %p97 = scmp.ne.s32.totalorder %s86, %s89
      %p98 = scmp.eq.s32.totalorder %s17, 2
      %p99 = por %p97, %p98
      %p100 = scmp.ne.s32.totalorder %s89, %s90
      %p101 = scmp.eq.s32.totalorder %s17, 0
      %p102 = por %p100, %p101
      %p103 = scmp.ne.s32.totalorder %s89, %s90
      %p104 = scmp.eq.s32.totalorder %s18, 2
      %p105 = por %p103, %p104
      %p107 = scmp.ne.s32.totalorder %s90, %s106
      %p108 = scmp.eq.s32.totalorder %s18, 0
      %p109 = por %p107, %p108
      %p110 = scmp.le.s32.totalorder 1, %s12
      %p111 = scmp.lt.s32.totalorder %s12, 4
      %p112 = pnand %p110, %p111
      %p113 = pneg %p112
      // Predicated region
      $region9: #{tpu_custom_call.1} parent=5 // pred_check
        _
      $region10: #{tpu_custom_call.1} parent=5 // pred_check_branch
        %115 = sbr.rel (%p112) target = $region12
      $region11: #{tpu_custom_call.1} parent=5 // pred_region
        %s116 = ssub.s32 %s12, 1
        // Predicated region
        $region13: #{tpu_custom_call.1} parent=11 // pred_check
          %p117 = pneg %p50
        $region14: #{tpu_custom_call.1} parent=11 // pred_check_branch
          %119 = sbr.rel (%p117) target = $region16
        $region15: #{tpu_custom_call.1} parent=11 // pred_region
          %121 = vsyncadd [#allocation5], 0
          %s122 = smul.addr %s21, 4
          %s123 = scalar_lea.hbm %s0, %s122
          %s125 = sshll.u32 %s123, 4
          %s126 = int_to_ptr.hbm [resolvable:$true] %s125
          %s127 = sshll.u32 [#allocation4], 4
          %s128 = int_to_ptr.vmem [resolvable:$true] %s127
          %130 = dma.hbm_to_vmem [thread:$0]  %s126, 64, %s128, [#allocation5]
        $region16: #{tpu_custom_call.1} parent=11 // pred_fallthru
          _
      $region12: #{tpu_custom_call.1} parent=5 // pred_fallthru
        _
      %p131 = scmp.lt.s32.totalorder %s12, 3
      // Predicated region
      $region17: #{tpu_custom_call.1} parent=5 // pred_check
        %p132 = pneg %p131
      $region18: #{tpu_custom_call.1} parent=5 // pred_check_branch
        %134 = sbr.rel (%p132) target = $region20
      $region19: #{tpu_custom_call.1} parent=5 // pred_region
        // Predicated region
        $region21: #{tpu_custom_call.1} parent=19 // pred_check
          %p135 = pneg %p70
        $region22: #{tpu_custom_call.1} parent=19 // pred_check_branch
          %137 = sbr.rel (%p135) target = $region24
        $region23: #{tpu_custom_call.1} parent=19 // pred_region
          %s138 = sand.u32 %s60, 1
          %s139 = scalar_lea.sflag [#allocation7], %s138
          %s140 = sand.u32 %s60, 1
          %s141 = smul.addr %s140, 64
          %s142 = scalar_lea.vmem [#allocation6], %s141
          %144 = vsyncadd %s139, 0
          %s145 = smul.addr %s20, 4
          %s146 = scalar_lea.hbm %s1, %s145
          %s147 = sshll.u32 %s146, 4
          %s148 = int_to_ptr.hbm [resolvable:$true] %s147
          %s149 = sshll.u32 %s142, 4
          %s150 = int_to_ptr.vmem [resolvable:$true] %s149
          %155 = dma.hbm_to_vmem [thread:$0]  %s148, 1024, %s150, %s139, 192, 64, 4
        $region24: #{tpu_custom_call.1} parent=19 // pred_fallthru
          _
      $region20: #{tpu_custom_call.1} parent=5 // pred_fallthru
        _
      %p156 = scmp.le.s32.totalorder 1, %s12
      %p157 = scmp.lt.s32.totalorder %s12, 4
      %p158 = pnand %p156, %p157
      %p159 = pneg %p158
      // Predicated region
      $region25: #{tpu_custom_call.1} parent=5 // pred_check
        _
      $region26: #{tpu_custom_call.1} parent=5 // pred_check_branch
        %161 = sbr.rel (%p158) target = $region28
      $region27: #{tpu_custom_call.1} parent=5 // pred_region
        %s162 = ssub.s32 %s12, 1
        // Predicated region
        $region29: #{tpu_custom_call.1} parent=27 // pred_check
          %p163 = pneg %p50
        $region30: #{tpu_custom_call.1} parent=27 // pred_check_branch
          %165 = sbr.rel (%p163) target = $region32
        $region31: #{tpu_custom_call.1} parent=27 // pred_region
          %167 = dma.done [#allocation5], 64
        $region32: #{tpu_custom_call.1} parent=27 // pred_fallthru
          _
        %s168 = sand.u32 %s63, 1
        %s169 = scalar_lea.sflag [#allocation7], %s168
        %s170 = sand.u32 %s63, 1
        %s171 = smul.addr %s170, 64
        %s172 = scalar_lea.vmem [#allocation6], %s171
        // Predicated region
        $region33: #{tpu_custom_call.1} parent=27 // pred_check
          %p173 = pneg %p76
        $region34: #{tpu_custom_call.1} parent=27 // pred_check_branch
          %175 = sbr.rel (%p173) target = $region36
        $region35: #{tpu_custom_call.1} parent=27 // pred_region
          %177 = dma.done %s169, 1024
        $region36: #{tpu_custom_call.1} parent=27 // pred_fallthru
          _
        %p178 = pneg %p50
        %p179 = pneg %p47
        %s180 = sand.u32 %s63, 1
        %s181 = scalar_lea.sflag [#allocation7], %s180
        %s182 = sand.u32 %s63, 1
        %s183 = smul.addr %s182, 64
        %s184 = scalar_lea.vmem [#allocation6], %s183
        %p185 = pneg %p76
        %p186 = pneg %p73
        %p187 = pneg %p102
        %p188 = pneg %p99
        %p189 = scmp.lt.s32.totalorder %s21, 0
        %s190 = scalar_select %p189, %s21, 0
        %s191 = smul.addr %s190, 8
        %s192 = scalar_lea.vmem %s2, %s191
        %p193 = scmp.lt.s32.totalorder %s21, 0
        %s194 = scalar_select %p193, %s21, 0
        %s195 = smul.addr %s194, 8
        %s196 = scalar_lea.vmem %s2, %s195
        %p197 = scmp.eq.s32.totalorder %s22, 0
        // Predicated region
        $region37: #{tpu_custom_call.1} parent=27 // pred_check
          %p198 = pneg %p197
        $region38: #{tpu_custom_call.1} parent=27 // pred_check_branch
          %200 = sbr.rel (%p198) target = $region40
        $region39: #{tpu_custom_call.1} parent=27 // pred_region
          %vm201 = vcmask 7168
          %202 = vst.msk [vmem:[#allocation2] sm:$0xff] %vm201, -1e+30
          %203 = vst.msk [vmem:[#allocation3] sm:$0xff] %vm201, 0.0
        $region40: #{tpu_custom_call.1} parent=27 // pred_fallthru
          _
        %v204 = vld [vmem:[#allocation4] sm:$0xf]
        %v205 = vld [vmem:[%s172] sm:$0xf]
        %v206 = vld [vmem:[%s172 + $0x4] sm:$0xf]
        %v207 = vld [vmem:[%s172 + $0x8] sm:$0xf]
        %v208 = vld [vmem:[%s172 + $0xc] sm:$0xf]
        %v209 = vld [vmem:[%s172 + $0x10] sm:$0xf]
        %v210 = vld [vmem:[%s172 + $0x14] sm:$0xf]
        %v211 = vld [vmem:[%s172 + $0x18] sm:$0xf]
        %v212 = vld [vmem:[%s172 + $0x1c] sm:$0xf]
        %v213 = vld [vmem:[%s172 + $0x20] sm:$0xf]
        %v214 = vld [vmem:[%s172 + $0x24] sm:$0xf]
        %v215 = vld [vmem:[%s172 + $0x28] sm:$0xf]
        %v216 = vld [vmem:[%s172 + $0x2c] sm:$0xf]
        %v217 = vld [vmem:[%s172 + $0x30] sm:$0xf]
        %v218 = vld [vmem:[%s172 + $0x34] sm:$0xf]
        %v219 = vld [vmem:[%s172 + $0x38] sm:$0xf]
        %v220 = vld [vmem:[%s172 + $0x3c] sm:$0xf]
        %v237 = vunpack.c.l.b16 %v205
        %v238 = vunpack.c.l.b16 %v206
        %v239 = vunpack.c.l.b16 %v207
        %v240 = vunpack.c.l.b16 %v208
        %v241 = vunpack.c.l.b16 %v209
        %v242 = vunpack.c.l.b16 %v210
        %v243 = vunpack.c.l.b16 %v211
        %v244 = vunpack.c.l.b16 %v212
        %v245 = vunpack.c.l.b16 %v213
        %v246 = vunpack.c.l.b16 %v214
        %v247 = vunpack.c.l.b16 %v215
        %v248 = vunpack.c.l.b16 %v216
        %v249 = vunpack.c.l.b16 %v217
        %v250 = vunpack.c.l.b16 %v218
        %v251 = vunpack.c.l.b16 %v219
        %v252 = vunpack.c.l.b16 %v220
        %v253 = vpack.c.b16 %v238, %v237
        %v254 = vpack.c.b16 %v240, %v239
        %v255 = vpack.c.b16 %v242, %v241
        %v256 = vpack.c.b16 %v244, %v243
        %v257 = vpack.c.b16 %v246, %v245
        %v258 = vpack.c.b16 %v248, %v247
        %v259 = vpack.c.b16 %v250, %v249
        %v260 = vpack.c.b16 %v252, %v251
        %269 = vmatpush.bf16.msra.mxu0 %v260
        %270 = vmatpush.bf16.msra.mxu0 %v259
        %271 = vmatpush.bf16.msra.mxu0 %v258
        %272 = vmatpush.bf16.msra.mxu0 %v257
        %273 = vmatpush.bf16.msra.mxu0 %v256
        %274 = vmatpush.bf16.msra.mxu0 %v255
        %275 = vmatpush.bf16.msra.mxu0 %v254
        %276 = vmatpush.bf16.msra.mxu0 %v253
        %277 = vmatmul.bf16.gmra.mxu0 %v204
        %v278 = vpop.f32.mrf.mxu0
        %v279 = vadd.f32 0.0, %v278
        %v280 = vpop.f32.mrf.mxu0
        %281 = vdwg.mxu0
        %s282 = smul.u32 %s22, 128
        %v283 = vlaneseq
        %v284 = vand.u32 %v283, 127
        %v285 = vstv %s282
        %v286 = vadd.s32 %v285, %v284
        %vm287 = vcmp.lt.s32.totalorder %v286, 300
        %v288 = vsel %vm287, %v279, -1e+30
        %v289 = vld [vmem:[#allocation2] sm:$0xff]
        %290 = vmax.xlane.f32.xlu0 %v288
        %v291 = vpop.xlane.xlu0 %290
        %v292 = vmax.f32 %v289, %v291
        %v293 = vld [vmem:[#allocation3] sm:$0xff]
        %v294 = vsub.f32 %v289, %v292
        %v295 = vmul.f32 %v294, 1.442695
        %v296 = vpow.pop %v295
        %v297 = vmul.f32 %v293, %v296
        %299 = vset.pattern.permute.xlu0 0
        %300 = vperm.xlu0 %299, %v292
        %v301 = vpop.permute.xlu0 %300
        %v303 = vsub.f32 %v288, %v301
        %v304 = vmul.f32 %v303, 1.442695
        %v305 = vpow.pop %v304
        %306 = vadd.xlane.f32.xlu0 %v305
        %v307 = vpop.xlane.xlu0 %306
        %v308 = vadd.f32 %v297, %v307
        %vm309 = vcmask 7168
        %310 = vst.msk [vmem:[#allocation3] sm:$0xff] %vm309, %v308
        %311 = vst.msk [vmem:[#allocation2] sm:$0xff] %vm309, %v292
        %p312 = scmp.eq.s32.totalorder %s22, 2
        // Predicated region
        $region41: #{tpu_custom_call.1} parent=27 // pred_check
          %p313 = pneg %p312
        $region42: #{tpu_custom_call.1} parent=27 // pred_check_branch
          %315 = sbr.rel (%p313) target = $region44
        $region43: #{tpu_custom_call.1} parent=27 // pred_region
          %v316 = vld [vmem:[#allocation2] sm:$0xff]
          %v317 = vld [vmem:[#allocation3] sm:$0xff]
          %v318 = vlog2.pop %v317
          %v319 = vmul.f32 %v318, 0.6931472
          %v320 = vadd.f32 %v316, %v319
          %321 = vst.msk [vmem:[%s196] sm:$0xff] %vm309, %v320
        $region44: #{tpu_custom_call.1} parent=27 // pred_fallthru
          _
        %p322 = scmp.lt.s32.totalorder %s21, 0
        %s323 = scalar_select %p322, %s21, 0
        %s324 = smul.addr %s323, 8
        %s325 = scalar_lea.vmem %s2, %s324
        // Predicated region
        $region45: #{tpu_custom_call.1} parent=27 // pred_check
          %p326 = pneg %p99
        $region46: #{tpu_custom_call.1} parent=27 // pred_check_branch
          %328 = sbr.rel (%p326) target = $region48
        $region47: #{tpu_custom_call.1} parent=27 // pred_region
          _
        $region48: #{tpu_custom_call.1} parent=27 // pred_fallthru
          _
        // Predicated region
        $region49: #{tpu_custom_call.1} parent=27 // pred_check
          %p329 = pneg %p99
        $region50: #{tpu_custom_call.1} parent=27 // pred_check_branch
          %331 = sbr.rel (%p329) target = $region52
        $region51: #{tpu_custom_call.1} parent=27 // pred_region
          %p332 = scmp.lt.s32.totalorder %s21, 0
          %s333 = scalar_select %p332, %s21, 0
          %s334 = smul.addr %s333, 8
          %s335 = scalar_lea.vmem %s2, %s334
        $region52: #{tpu_custom_call.1} parent=27 // pred_fallthru
          _
      $region28: #{tpu_custom_call.1} parent=5 // pred_fallthru
        _
      %p336 = scmp.le.s32.totalorder 2, %s12
      // Predicated region
      $region53: #{tpu_custom_call.1} parent=5 // pred_check
        %p337 = pneg %p336
      $region54: #{tpu_custom_call.1} parent=5 // pred_check_branch
        %339 = sbr.rel (%p337) target = $region56
      $region55: #{tpu_custom_call.1} parent=5 // pred_region
        %s340 = ssub.s32 %s12, 2
      $region56: #{tpu_custom_call.1} parent=5 // pred_fallthru
        _
    $region6: #{tpu_custom_call.1} parent=1 // loop_footer
      %s16 = sadd.s32 1, %s12
    $region7: #{tpu_custom_call.1} parent=1 // loop_footer_branch
      %11 = sbr.rel target = $region3
    $region8: #{tpu_custom_call.1} parent=1 // loop_exit
      _
    %341 = vsyncpa [#allocation5], 1
    %s342 = scalar_lea.sflag [#allocation5], 1
    %343 = vsyncpa %s342, 1
    %344 = vsyncpa [#allocation7], 1
    %s345 = scalar_lea.sflag [#allocation7], 1
    %346 = vsyncpa %s345, 1

</llo_original>
